<compile_context>
chip_gen: v5e
topology: v5e:2x2
jax: 0.10.0
libtpu: 0.0.40
codegen_flags: <defaults>
</compile_context>

<pallas_src>
import numpy as np
import jax
import jax.numpy as jnp
from jax.experimental import pallas as pl
from jax.experimental.pallas import tpu as pltpu

D = 32            # flow dimension d
N_ROT = 3         # number of rotors in the rotor stack
N_REV = 2         # number of reversible (additive-coupling) blocks
H = D // 2        # coupling split size
B = 8             # default test batch size

LANES = 128
TB_CAP = 4096     # packed rows per grid step (x + z double-buffered ~ 8 MiB)


def enigma_flow_kernel(x_ref, w_ref, cw_ref, r_ref, z_ref):
    """Hot path on lane-packed data (4 samples per 128-lane row).

    All weights arrive pre-masked / pre-fused / pre-transposed / block-diagonal
    (kron(I_pack, .)), so the whole flow is 4 lane-dense MXU matmuls:
      prelude (plugboard*mask + 3 rotors), 2 padded couplings, reflector.
    """
    y = jnp.dot(x_ref[...], w_ref[...], preferred_element_type=jnp.float32)
    for c in range(N_REV):
        # y += tanh(y @ Cpad): Cpad = [[0, cw.T],[0,0]] per sample block, so the
        # first half of each block is updated by exactly tanh(0) = 0.
        y = y + jnp.tanh(jnp.dot(y, cw_ref[c], preferred_element_type=jnp.float32))
    z_ref[...] = jnp.dot(y, r_ref[...], preferred_element_type=jnp.float32)


def _block_diag(w, pack):
    """kron(I_pack, w): exact block-diagonal replication (zero off-diag blocks)."""
    return jnp.kron(jnp.eye(pack, dtype=w.dtype), w)


def enigma_flow_forward(x, params):
    """Returns (z, log_prob). The torch forward returns only z; log_prob is
    computed exactly as in the torch code (and used by .log_prob)."""
    pw, pm, rot, cw, refl = params
    Bx, d = x.shape

    # ---- one-time wrapper-side weight preparation (hoisted out of the kernel) ----
    w_plug = pw * pm                              # also needed for slogdet below
    # Fold plugboard + rotor stack: y = x @ (rot2 @ rot1 @ rot0 @ (pw*pm)).T
    w_pre = w_plug
    for r in range(N_ROT):
        w_pre = rot[r] @ w_pre
    w_pre_t = w_pre.T                             # (d, d), applied as x @ w_pre_t
    refl_t = refl.T                               # (d, d)
    # Padded coupling matrices: y @ Cpad = [0 | y1 @ cw.T]  (exact zeros).
    h = d // 2
    zeros_h = jnp.zeros((h, h), jnp.float32)
    cpad = jnp.stack([
        jnp.concatenate([
            jnp.concatenate([zeros_h, cw[c].T], axis=1),
            jnp.zeros((h, d), jnp.float32)], axis=0)
        for c in range(N_REV)
    ])                                            # (N_REV, d, d)

    # ---- lane packing: PACK samples per 128-lane row ----
    pack = LANES // d if (d <= LANES and LANES % d == 0) else 1
    width = pack * d
    w_k = _block_diag(w_pre_t, pack)                                   # (width, width)
    cw_k = jnp.stack([_block_diag(cpad[c], pack) for c in range(N_REV)])
    r_k = _block_diag(refl_t, pack)

    bp = ((Bx + pack - 1) // pack) * pack
    x_p = jnp.pad(x, ((0, bp - Bx), (0, 0))) if bp != Bx else x
    p_rows = bp // pack
    x_packed = x_p.reshape(p_rows, width)         # row-major: samples 4r..4r+3

    # ---- packed-row tiling ----
    if p_rows <= 8:
        tb = p_rows                               # block == full array (allowed)
        p_pad = p_rows
    else:
        # >= 2 grid steps so v7x's two TensorCores both get work; sublane-aligned.
        tb = max(8, min(TB_CAP, (max(8, p_rows // 2) // 8) * 8))
        p_pad = ((p_rows + tb - 1) // tb) * tb
    if p_pad != p_rows:
        x_packed = jnp.pad(x_packed, ((0, p_pad - p_rows), (0, 0)))

    kernel = pl.pallas_call(
        enigma_flow_kernel,
        out_shape=jax.ShapeDtypeStruct((p_pad, width), jnp.float32),
        grid_spec=pltpu.PrefetchScalarGridSpec(
            num_scalar_prefetch=0,
            grid=(p_pad // tb,),
            in_specs=[
                pl.BlockSpec((tb, width), lambda i: (i, 0)),             # x tile
                pl.BlockSpec((width, width), lambda i: (0, 0)),          # fused prelude
                pl.BlockSpec((N_REV, width, width), lambda i: (0, 0, 0)),# padded couplings
                pl.BlockSpec((width, width), lambda i: (0, 0)),          # reflector
            ],
            out_specs=pl.BlockSpec((tb, width), lambda i: (i, 0)),
        ),
        compiler_params=pltpu.CompilerParams(
            # single batch axis, resident across nothing -> safe to shard
            dimension_semantics=("parallel",)),
    )
    z_packed = kernel(x_packed, w_k, cw_k, r_k)

    # Unpack: drop padded packed-rows, then padded samples.
    z = z_packed[:p_rows].reshape(bp, d)[:Bx]

    # Analytical Jacobian log-determinant of the masked plugboard (same scalar
    # for every sample); slogdet already returns log|det| regardless of sign,
    # matching the torch semantics without the redundant det() fallback.
    # TODO(synk): slogdet (LU factorization) of the d x d plugboard has no clean
    # Pallas equivalent; it stays in plain JAX glue.
    _, logdet = jnp.linalg.slogdet(w_plug)

    # Gaussian log-prior: trivial row reduction done in XLA from lane-dense z.
    log_prior = (-0.5 * jnp.sum(z * z, axis=1)
                 - 0.5 * d * jnp.log(jnp.asarray(2.0 * np.pi, jnp.float32)))
    log_prob = log_prior + logdet
    return z, log_prob


def make_params(key):
    k1, k2, k3, k4, k5 = jax.random.split(key, 5)
    # plugboard: near-identity weight + random binary mask (diag forced to 1)
    pw = jnp.eye(D, dtype=jnp.float32) + 0.1 * jax.random.normal(k1, (D, D), jnp.float32)
    pm = (jax.random.uniform(k2, (D, D)) > 0.5).astype(jnp.float32)
    pm = jnp.where(jnp.eye(D, dtype=bool), 1.0, pm)
    # rotors: orthogonal matrices via QR
    rot = jnp.stack([
        jnp.linalg.qr(jax.random.normal(k, (D, D), jnp.float32))[0]
        for k in jax.random.split(k3, N_ROT)
    ]).astype(jnp.float32)
    # coupling nets: small dense layers on half the features
    cw = 0.1 * jax.random.normal(k4, (N_REV, H, H), jnp.float32)
    # reflector: Householder reflection (symmetric orthogonal)
    v = jax.random.normal(k5, (D, 1), jnp.float32)
    refl = jnp.eye(D, dtype=jnp.float32) - 2.0 * (v @ v.T) / jnp.sum(v * v)
    return pw, pm, rot, cw, refl


def reference_forward(x, params):
    """Pure-JAX reference mirroring the torch Enigma forward + log_prob."""
    pw, pm, rot, cw, refl = params
    w = pw * pm
    y = x @ w.T
    for r in range(N_ROT):
        y = y @ rot[r].T
    for c in range(N_REV):
        y1, y2 = y[:, :H], y[:, H:]
        y2 = y2 + jnp.tanh(y1 @ cw[c].T)
        y = jnp.concatenate([y1, y2], axis=1)
    z = y @ refl.T
    _, logdet = jnp.linalg.slogdet(w)
    log_prior = (-0.5 * jnp.sum(z * z, axis=1)
                 - 0.5 * D * jnp.log(jnp.asarray(2.0 * np.pi, jnp.float32)))
    return z, log_prior + logdet


if __name__ == "__main__":
    key = jax.random.PRNGKey(0)
    kx, kx2, kp = jax.random.split(key, 3)
    params = make_params(kp)
    fwd = jax.jit(enigma_flow_forward)

    # Small test (grid = 1, block == full packed array).
    x = jax.random.normal(kx, (B, D), jnp.float32)
    z, log_prob = fwd(x, params)
    jax.block_until_ready((z, log_prob))
    z_ref, log_prob_ref = reference_forward(x, params)
    np.testing.assert_allclose(np.asarray(z), np.asarray(z_ref), rtol=1e-4, atol=1e-4)
    np.testing.assert_allclose(np.asarray(log_prob), np.asarray(log_prob_ref),
                               rtol=1e-4, atol=1e-4)
    assert z.shape == (B, D) and log_prob.shape == (B,)

    # Ragged batch test: exercises sample padding, packed-row padding, grid > 1.
    x2 = jax.random.normal(kx2, (70, D), jnp.float32)
    z2, log_prob2 = fwd(x2, params)
    jax.block_until_ready((z2, log_prob2))
    z2_ref, log_prob2_ref = reference_forward(x2, params)
    np.testing.assert_allclose(np.asarray(z2), np.asarray(z2_ref), rtol=1e-4, atol=1e-4)
    np.testing.assert_allclose(np.asarray(log_prob2), np.asarray(log_prob2_ref),
                               rtol=1e-4, atol=1e-4)
    assert z2.shape == (70, D) and log_prob2.shape == (70,)

    print("KERNEL_OK")
</pallas_src>

<mosaic_0001>
module attributes {stable_mosaic.version = 11 : i64} {
  func.func @enigma_flow_kernel(%arg0: i32, %arg1: memref<2x128xf32, #tpu.memory_space<vmem>>, %arg2: memref<128x128xf32, #tpu.memory_space<vmem>>, %arg3: memref<2x128x128xf32, #tpu.memory_space<vmem>>, %arg4: memref<128x128xf32, #tpu.memory_space<vmem>>, %arg5: memref<2x128xf32, #tpu.memory_space<vmem>>) attributes {dimension_semantics = [#tpu.dimension_semantics<parallel>], iteration_bounds = array<i64: 1>, scalar_prefetch = 0 : i64, scratch_operands = 0 : i64, tpu.core_type = #tpu.core_type<tc>, window_params = [{transform_indices = @transform_0, window_bounds = array<i64: 2, 128>}, {pipeline_mode = #tpu.pipeline_mode<synchronous>, transform_indices = @transform_1, window_bounds = array<i64: 128, 128>}, {pipeline_mode = #tpu.pipeline_mode<synchronous>, transform_indices = @transform_2, window_bounds = array<i64: 2, 128, 128>}, {pipeline_mode = #tpu.pipeline_mode<synchronous>, transform_indices = @transform_3, window_bounds = array<i64: 128, 128>}, {transform_indices = @transform_4, window_bounds = array<i64: 2, 128>}]} {
    %c0 = arith.constant 0 : index
    %c0_0 = arith.constant 0 : index
    %0 = vector.load %arg1[%c0, %c0_0] : memref<2x128xf32, #tpu.memory_space<vmem>>, vector<2x128xf32>
    %c0_1 = arith.constant 0 : index
    %c0_2 = arith.constant 0 : index
    %1 = vector.load %arg2[%c0_1, %c0_2] : memref<128x128xf32, #tpu.memory_space<vmem>>, vector<128x128xf32>
    %cst = arith.constant dense<0.000000e+00> : vector<2x128xf32>
    %2 = tpu.matmul %0, %1, %cst {dimension_numbers = #tpu.dot_dimension_numbers<[1], [0], [0], [1], [0, 0, 1, 1], [], []>} : vector<2x128xf32>, vector<128x128xf32>, vector<2x128xf32> -> vector<2x128xf32>
    %c0_3 = arith.constant 0 : index
    %c0_4 = arith.constant 0 : index
    %c0_5 = arith.constant 0 : index
    %3 = vector.load %arg3[%c0_3, %c0_4, %c0_5] : memref<2x128x128xf32, #tpu.memory_space<vmem>>, vector<1x128x128xf32>
    %4 = vector.shape_cast %3 : vector<1x128x128xf32> to vector<128x128xf32>
    %cst_6 = arith.constant dense<0.000000e+00> : vector<2x128xf32>
    %5 = tpu.matmul %2, %4, %cst_6 {dimension_numbers = #tpu.dot_dimension_numbers<[1], [0], [0], [1], [0, 0, 1, 1], [], []>} : vector<2x128xf32>, vector<128x128xf32>, vector<2x128xf32> -> vector<2x128xf32>
    %6 = math.tanh %5 : vector<2x128xf32>
    %7 = arith.addf %2, %6 : vector<2x128xf32>
    %c1 = arith.constant 1 : index
    %c0_7 = arith.constant 0 : index
    %c0_8 = arith.constant 0 : index
    %8 = vector.load %arg3[%c1, %c0_7, %c0_8] : memref<2x128x128xf32, #tpu.memory_space<vmem>>, vector<1x128x128xf32>
    %9 = vector.shape_cast %8 : vector<1x128x128xf32> to vector<128x128xf32>
    %cst_9 = arith.constant dense<0.000000e+00> : vector<2x128xf32>
    %10 = tpu.matmul %7, %9, %cst_9 {dimension_numbers = #tpu.dot_dimension_numbers<[1], [0], [0], [1], [0, 0, 1, 1], [], []>} : vector<2x128xf32>, vector<128x128xf32>, vector<2x128xf32> -> vector<2x128xf32>
    %11 = math.tanh %10 : vector<2x128xf32>
    %12 = arith.addf %7, %11 : vector<2x128xf32>
    %c0_10 = arith.constant 0 : index
    %c0_11 = arith.constant 0 : index
    %13 = vector.load %arg4[%c0_10, %c0_11] : memref<128x128xf32, #tpu.memory_space<vmem>>, vector<128x128xf32>
    %cst_12 = arith.constant dense<0.000000e+00> : vector<2x128xf32>
    %14 = tpu.matmul %12, %13, %cst_12 {dimension_numbers = #tpu.dot_dimension_numbers<[1], [0], [0], [1], [0, 0, 1, 1], [], []>} : vector<2x128xf32>, vector<128x128xf32>, vector<2x128xf32> -> vector<2x128xf32>
    %c0_13 = arith.constant 0 : index
    %c0_14 = arith.constant 0 : index
    %15 = vector.load %arg5[%c0_13, %c0_14] : memref<2x128xf32, #tpu.memory_space<vmem>>, vector<2x128xf32>
    tpu.vector_store %arg5[%c0_13, %c0_14], %14 {strides = array<i32>} : memref<2x128xf32, #tpu.memory_space<vmem>>, vector<2x128xf32>,
    return
  }
  func.func @transform_0(%arg0: i32) -> (i32, i32) {
    %c0_i32 = arith.constant 0 : i32
    %c0_i32_0 = arith.constant 0 : i32
    return %arg0, %c0_i32 : i32, i32
  }
  func.func @transform_1(%arg0: i32) -> (i32, i32) {
    %c0_i32 = arith.constant 0 : i32
    %c0_i32_0 = arith.constant 0 : i32
    %c0_i32_1 = arith.constant 0 : i32
    return %c0_i32, %c0_i32_0 : i32, i32
  }
  func.func @transform_2(%arg0: i32) -> (i32, i32, i32) {
    %c0_i32 = arith.constant 0 : i32
    %c0_i32_0 = arith.constant 0 : i32
    %c0_i32_1 = arith.constant 0 : i32
    %c0_i32_2 = arith.constant 0 : i32
    return %c0_i32, %c0_i32_0, %c0_i32_1 : i32, i32, i32
  }
  func.func @transform_3(%arg0: i32) -> (i32, i32) {
    %c0_i32 = arith.constant 0 : i32
    %c0_i32_0 = arith.constant 0 : i32
    %c0_i32_1 = arith.constant 0 : i32
    return %c0_i32, %c0_i32_0 : i32, i32
  }
  func.func @transform_4(%arg0: i32) -> (i32, i32) {
    %c0_i32 = arith.constant 0 : i32
    %c0_i32_0 = arith.constant 0 : i32
    return %arg0, %c0_i32 : i32, i32
  }
}

</mosaic_0001>

<llo_original>
// kernel: mul.17
$region0: #{mul.17}
  #allocation4 [shape = 's32[1]{0}', space=sflag, size = 0x4, scoped, tag = 'scoped memory for mul.17']
  %s0 = inlined_call_operand.hbm [shape: f32[32,32], index: 0, kind: input, shape index: {}]
  %s1 = inlined_call_operand.hbm [shape: f32[32,32], index: 1, kind: input, shape index: {}]
  %s2 = inlined_call_operand.vmem [shape: f32[32,32], index: 2, kind: output, shape index: {}]
  $region1: #{mul.17} parent=0
    #allocation0 [shape = 'u8[16384]{0}', space=vmem, size = 0x4000, scoped, tag = 'operand span for operand 0']
    #allocation1 [shape = 's32[1]{0}', space=sflag, size = 0x4, scoped, tag = 'scoped memory for mul.17']
    #allocation2 [shape = 'u8[16384]{0}', space=vmem, size = 0x4000, scoped, tag = 'operand span for operand 1']
    #allocation3 [shape = 's32[1]{0}', space=sflag, size = 0x4, scoped, tag = 'scoped memory for mul.17']
    %3 = vsyncpa [#allocation1], 0
    %4 = vsyncpa [#allocation3], 0
    %6 = vsyncadd [#allocation1], 0
    %s7 = sshll.u32 %s0, 4
    %s8 = int_to_ptr.hbm [resolvable:$true] %s7
    %s9 = sshll.u32 [#allocation0], 4
    %s10 = int_to_ptr.vmem [resolvable:$true] %s9
    %15 = dma.hbm_to_vmem [thread:$0]  %s8, 512, %s10, [#allocation1], 128, 128, 8
    %17 = vsyncadd [#allocation3], 0
    %s18 = sshll.u32 %s1, 4
    %s19 = int_to_ptr.hbm [resolvable:$true] %s18
    %s20 = sshll.u32 [#allocation2], 4
    %s21 = int_to_ptr.vmem [resolvable:$true] %s20
    %26 = dma.hbm_to_vmem [thread:$0]  %s19, 512, %s21, [#allocation3], 128, 128, 8
    %28 = dma.done [#allocation1], 512
    %30 = dma.done [#allocation3], 512
    %v31 = vld [vmem:[#allocation0] sm:$0xff]
    %v32 = vld [vmem:[#allocation2] sm:$0xff]
    %33 = xla_tuple %v31, %v32
    %34 = xla_tuple %33
    %v35 = vmul.f32 %v31, %v32
    %36 = xla_tuple %v35
    %37 = vst [vmem:[%s2] sm:$0xff] %v35
    %s38 = scalar_lea.vmem [#allocation0], 8
    %v39 = vld [vmem:[%s38] sm:$0xff]
    %s40 = scalar_lea.vmem [#allocation2], 8
    %v41 = vld [vmem:[%s40] sm:$0xff]
    %42 = xla_tuple %v39, %v41
    %43 = xla_tuple %42
    %v44 = vmul.f32 %v39, %v41
    %45 = xla_tuple %v44
    %s46 = scalar_lea.vmem %s2, 8
    %47 = vst [vmem:[%s46] sm:$0xff] %v44
    %s48 = scalar_lea.vmem [#allocation0], 16
    %v49 = vld [vmem:[%s48] sm:$0xff]
    %s50 = scalar_lea.vmem [#allocation2], 16
    %v51 = vld [vmem:[%s50] sm:$0xff]
    %52 = xla_tuple %v49, %v51
    %53 = xla_tuple %52
    %v54 = vmul.f32 %v49, %v51
    %55 = xla_tuple %v54
    %s56 = scalar_lea.vmem %s2, 16
    %57 = vst [vmem:[%s56] sm:$0xff] %v54
    %s58 = scalar_lea.vmem [#allocation0], 24
    %v59 = vld [vmem:[%s58] sm:$0xff]
    %s60 = scalar_lea.vmem [#allocation2], 24
    %v61 = vld [vmem:[%s60] sm:$0xff]
    %62 = xla_tuple %v59, %v61
    %63 = xla_tuple %62
    %v64 = vmul.f32 %v59, %v61
    %65 = xla_tuple %v64
    %s66 = scalar_lea.vmem %s2, 24
    %67 = vst [vmem:[%s66] sm:$0xff] %v64
    %68 = vsyncpa [#allocation1], 1
    %69 = vsyncpa [#allocation3], 1

// kernel: custom-call.2
$region0: #{custom-call.2}
  %s0 = inlined_call_operand.vmem [shape: f32[32,32], index: 0, kind: input, shape index: {}]
  %s1 = inlined_call_operand.vmem [shape: f32[32,32], index: 1, kind: output, shape index: {0}]
  %s2 = inlined_call_operand.hbm [shape: s32[32], index: 2, kind: output, shape index: {1}]
  %s3 = inlined_call_operand.hbm [shape: s32[32], index: 3, kind: output, shape index: {2}]
  %4 = xla_tuple %s1, %s2, %s3
  $region1: #{custom-call.2} parent=0
    #allocation0 [shape = 'u8[16384]{0}', space=vmem, size = 0x4000, scoped, tag = 'operand span for operand 0']
    #allocation1 [shape = 'u8[16384]{0}', space=vmem, size = 0x4000, scoped, tag = 'operand span for operand 1']
    #allocation2 [shape = 'u8[4096]{0}', space=vmem, size = 0x1000, scoped, tag = 'operand span for operand 2']
    #allocation3 [shape = 'u8[512]{0}', space=vmem, size = 0x400, scoped, tag = 'packed  for operand 2']
    #allocation4 [shape = 's32[1]{0}', space=sflag, size = 0x4, scoped, tag = 'scoped memory for custom-call.2']
    #allocation5 [shape = 'u8[4096]{0}', space=vmem, size = 0x1000, scoped, tag = 'operand span for operand 3']
    #allocation6 [shape = 'u8[512]{0}', space=vmem, size = 0x400, scoped, tag = 'packed  for operand 3']
    #allocation7 [shape = 's32[1]{0}', space=sflag, size = 0x4, scoped, tag = 'scoped memory for custom-call.2']
    #allocation8 [shape = 's32[32,128]{1,0}', space=vmem, size = 0x4000, scoped, tag = 'scratch for permutations']
    %5 = vsyncpa [#allocation4], 0
    %6 = vsyncpa [#allocation7], 0
    // Predicated region
    $region2: #{custom-call.2} parent=1 // pred_check
      _
    $region3: #{custom-call.2} parent=1 // pred_check_branch
      %8 = sbr.rel (0) target = $region5
    $region4: #{custom-call.2} parent=1 // pred_region
      %p10 = scmp.gt.s32.totalorder 4, 0
      // Predicated region
      $region6: #{custom-call.2} parent=4 // pred_check
        %p11 = pneg %p10
      $region7: #{custom-call.2} parent=4 // pred_check_branch
        %13 = sbr.rel (%p11) target = $region9
      $region8: #{custom-call.2} parent=4 // pred_region
        %s14 = ssub.s32 4, 1
        %s15 = smul.u32 %s14, 8
        %s16 = scalar_lea.vmem %s0, %s15
        %v17 = vld [vmem:[%s0] sm:$0xff]
        // While loop
        $region10: #{custom-call.2} parent=8 // loop_pre_header
          _
        $region11: #{custom-call.2} parent=8 // loop_header
          %s18 = sphi %s0, %s40
          %s19 = sphi [#allocation0], %s41
          %v20 = vphi %v17, %v42
          %s21 = ssub.s32 %s16, 64
          %p22 = scmp.gt.s32.totalorder %s18, %s21
        $region12: #{custom-call.2} parent=8 // loop_header_branch
          %24 = sbr.rel (%p22) target = $region16
        $region13: #{custom-call.2} parent=8 // loop_body
          %25 = vst [vmem:[%s19] sm:$0xff] %v20
          %v26 = vld [vmem:[%s18 + $0x8] sm:$0xff]
          %27 = vst [vmem:[%s19 + $0x8] sm:$0xff] %v26
          %v28 = vld [vmem:[%s18 + $0x10] sm:$0xff]
          %29 = vst [vmem:[%s19 + $0x10] sm:$0xff] %v28
          %v30 = vld [vmem:[%s18 + $0x18] sm:$0xff]
          %31 = vst [vmem:[%s19 + $0x18] sm:$0xff] %v30
          %v32 = vld [vmem:[%s18 + $0x20] sm:$0xff]
          %33 = vst [vmem:[%s19 + $0x20] sm:$0xff] %v32
          %v34 = vld [vmem:[%s18 + $0x28] sm:$0xff]
          %35 = vst [vmem:[%s19 + $0x28] sm:$0xff] %v34
          %v36 = vld [vmem:[%s18 + $0x30] sm:$0xff]
          %37 = vst [vmem:[%s19 + $0x30] sm:$0xff] %v36
          %v38 = vld [vmem:[%s18 + $0x38] sm:$0xff]
          %39 = vst [vmem:[%s19 + $0x38] sm:$0xff] %v38
        $region14: #{custom-call.2} parent=8 // loop_footer
          %s40 = scalar_lea.vmem %s18, 64
          %s41 = scalar_lea.vmem %s19, 64
          %v42 = vld [vmem:[%s18 + $0x40] sm:$0xff]
        $region15: #{custom-call.2} parent=8 // loop_footer_branch
          %43 = sbr.rel target = $region11
        $region16: #{custom-call.2} parent=8 // loop_exit
          _
        // While loop
        $region17: #{custom-call.2} parent=8 // loop_pre_header
          _
        $region18: #{custom-call.2} parent=8 // loop_header
          %s44 = sphi %s18, %s52
          %s45 = sphi %s19, %s53
          %v46 = vphi %v20, %v46
          %p47 = scmp.gt.s32.totalorder %s44, %s16
        $region19: #{custom-call.2} parent=8 // loop_header_branch
          %49 = sbr.rel (%p47) target = $region23
        $region20: #{custom-call.2} parent=8 // loop_body
          %v50 = vld [vmem:[%s44] sm:$0xff]
          %51 = vst [vmem:[%s45] sm:$0xff] %v50
        $region21: #{custom-call.2} parent=8 // loop_footer
          %s52 = scalar_lea.vmem %s44, 8
          %s53 = scalar_lea.vmem %s45, 8
        $region22: #{custom-call.2} parent=8 // loop_footer_branch
          %54 = sbr.rel target = $region18
        $region23: #{custom-call.2} parent=8 // loop_exit
          _
      $region9: #{custom-call.2} parent=4 // pred_fallthru
        _
      %s56 = ssub.s32 1, 1
      %s57 = smul.u32 4, 8
      %s58 = scalar_lea.vmem [#allocation0], %s57
      %s59 = smul.u32 4, 8
      %s60 = scalar_lea.vmem %s0, %s59
      %v61 = vld [vmem:[%s60] sm:%s56]
      %62 = vst [vmem:[%s58] sm:%s56] %v61
    $region5: #{custom-call.2} parent=1 // pred_fallthru
      _
    %v63 = vld [vmem:[#allocation0] sm:$0xff]
    %64 = vst [vmem:[#allocation1] sm:$0xff] %v63
    %s65 = scalar_lea.vmem [#allocation1], 8
    %s66 = scalar_lea.vmem [#allocation0], 8
    %v67 = vld [vmem:[%s66] sm:$0xff]
    %68 = vst [vmem:[%s65] sm:$0xff] %v67
    %s69 = scalar_lea.vmem [#allocation1], 16
    %s70 = scalar_lea.vmem [#allocation0], 16
    %v71 = vld [vmem:[%s70] sm:$0xff]
    %72 = vst [vmem:[%s69] sm:$0xff] %v71
    %s73 = scalar_lea.vmem [#allocation1], 24
    %s74 = scalar_lea.vmem [#allocation0], 24
    %v75 = vld [vmem:[%s74] sm:$0xff]
    %76 = vst [vmem:[%s73] sm:$0xff] %v75
    %77 = vst [vmem:[#allocation2] sm:$0x1] 0
    %v78 = vlaneseq
    %v79 = vshrl.u32 %v78, 7
    %v80 = vmov %v79
    loop: start=0, step=1, limit=4
    $region24: #{custom-call.2} parent=1 // loop_pre_header
      _
    $region25: #{custom-call.2} parent=1 // loop_header
      %s82 = sphi 0, %s86
      %p83 = scmp.ge.s32.totalorder %s82, 4
    $region26: #{custom-call.2} parent=1 // loop_header_branch
      %85 = sbr.rel (%p83) target = $region30
    $region27: #{custom-call.2} parent=1 // loop_body
      %s87 = smul.addr %s82, 8
      %s88 = scalar_lea.vmem [#allocation8], %s87
      %s89 = smul.u32 %s82, 8
      %v90 = vstv %s89
      %v91 = vadd.s32 %v80, %v90
      %92 = vst [vmem:[%s88] sm:$0xff] %v91
    $region28: #{custom-call.2} parent=1 // loop_footer
      %s86 = sadd.s32 1, %s82
    $region29: #{custom-call.2} parent=1 // loop_footer_branch
      %81 = sbr.rel target = $region25
    $region30: #{custom-call.2} parent=1 // loop_exit
      _
    loop: start=0, step=1, limit=32
    $region31: #{custom-call.2} parent=1 // loop_pre_header
      _
    $region32: #{custom-call.2} parent=1 // loop_header
      %s94 = sphi 0, %s98
      %p95 = scmp.ge.s32.totalorder %s94, 32
    $region33: #{custom-call.2} parent=1 // loop_header_branch
      %97 = sbr.rel (%p95) target = $region37
    $region34: #{custom-call.2} parent=1 // loop_body
      %v99 = vstv %s94
      %v100 = vlaneseq
      %v101 = vshrl.u32 %v100, 7
      %v102 = vmov %v101
      %v103 = vld [vmem:[#allocation1] sm:$0xff]
      %v104 = vand.u32 2147483647, %v103
      %v106 = vstv %s94
      %vm107 = vcmp.ge.s32.totalorder %v102, %v106
      %vm108 = vcmp.lt.s32.totalorder %v102, 32
      %vm109 = vmand %vm107, %vm108
      %vm110 = vcmp.lt.f32.partialorder -inf, %v104
      %vm111 = vmand %vm109, %vm110
      %v112 = vsel %vm111, %v102, %v99
      %v113 = vsel %vm111, %v104, -inf
      %s114 = scalar_lea.vmem [#allocation1], 8
      %v115 = vld [vmem:[%s114] sm:$0xff]
      %v116 = vand.u32 2147483647, %v115
      %v117 = vadd.s32 %v102, 8
      %v118 = vstv %s94
      %vm119 = vcmp.ge.s32.totalorder %v117, %v118
      %vm120 = vcmp.lt.s32.totalorder %v117, 32
      %vm121 = vmand %vm119, %vm120
      %vm122 = vcmp.lt.f32.partialorder %v113, %v116
      %vm123 = vmand %vm121, %vm122
      %v124 = vsel %vm123, %v117, %v112
      %v125 = vsel %vm123, %v116, %v113
      %s126 = scalar_lea.vmem [#allocation1], 16
      %v127 = vld [vmem:[%s126] sm:$0xff]
      %v128 = vand.u32 2147483647, %v127
      %v129 = vadd.s32 %v102, 16
      %v130 = vstv %s94
      %vm131 = vcmp.ge.s32.totalorder %v129, %v130
      %vm132 = vcmp.lt.s32.totalorder %v129, 32
      %vm133 = vmand %vm131, %vm132
      %vm134 = vcmp.lt.f32.partialorder %v125, %v128
      %vm135 = vmand %vm133, %vm134
      %v136 = vsel %vm135, %v129, %v124
      %v137 = vsel %vm135, %v128, %v125
      %s138 = scalar_lea.vmem [#allocation1], 24
      %v139 = vld [vmem:[%s138] sm:$0xff]
      %v140 = vand.u32 2147483647, %v139
      %v141 = vadd.s32 %v102, 24
      %v142 = vstv %s94
      %vm143 = vcmp.ge.s32.totalorder %v141, %v142
      %vm144 = vcmp.lt.s32.totalorder %v141, 32
      %vm145 = vmand %vm143, %vm144
      %vm146 = vcmp.lt.f32.partialorder %v137, %v140
      %vm147 = vmand %vm145, %vm146
      %v148 = vsel %vm147, %v141, %v136
      %v149 = vsel %vm147, %v140, %v137
      %v150 = vrot.slane %v149, 1
      %v151 = vrot.slane %v148, 1
      %vm152 = vcmp.ge.f32.partialorder %v150, %v149
      %v153 = vsel %vm152, %v150, %v149
      %v154 = vsel %vm152, %v151, %v148
      %v155 = vrot.slane %v150, 1
      %v156 = vrot.slane %v151, 1
      %vm157 = vcmp.ge.f32.partialorder %v155, %v153
      %v158 = vsel %vm157, %v155, %v153
      %v159 = vsel %vm157, %v156, %v154
      %v160 = vrot.slane %v155, 1
      %v161 = vrot.slane %v156, 1
      %vm162 = vcmp.ge.f32.partialorder %v160, %v158
      %v163 = vsel %vm162, %v160, %v158
      %v164 = vsel %vm162, %v161, %v159
      %v165 = vrot.slane %v160, 1
      %v166 = vrot.slane %v161, 1
      %vm167 = vcmp.ge.f32.partialorder %v165, %v163
      %v168 = vsel %vm167, %v165, %v163
      %v169 = vsel %vm167, %v166, %v164
      %v170 = vrot.slane %v165, 1
      %v171 = vrot.slane %v166, 1
      %vm172 = vcmp.ge.f32.partialorder %v170, %v168
      %v173 = vsel %vm172, %v170, %v168
      %v174 = vsel %vm172, %v171, %v169
      %v175 = vrot.slane %v170, 1
      %v176 = vrot.slane %v171, 1
      %vm177 = vcmp.ge.f32.partialorder %v175, %v173
      %v178 = vsel %vm177, %v175, %v173
      %v179 = vsel %vm177, %v176, %v174
      %v180 = vrot.slane %v175, 1
      %v181 = vrot.slane %v176, 1
      %vm182 = vcmp.ge.f32.partialorder %v180, %v178
      %v183 = vsel %vm182, %v180, %v178
      %v184 = vsel %vm182, %v181, %v179
      %s185 = ssub.s32 128, %s94
      %186 = vrot.lane.b32.xlu0 %v184, %s185
      %v187 = vpop.permute.xlu0 %186
      %s188 = vtos %v187
      %v189 = vstv %s94
      %v190 = vlaneseq
      %v191 = vand.u32 %v190, 127
      %vm192 = vcmp.eq.s32.totalorder %v191, %v189
      %v193 = vstv %s188
      %v194 = vld [vmem:[#allocation2] ss:$0 sm:$0xff]
      %v195 = vsel %vm192, %v193, %v194
      %196 = vst [vmem:[#allocation2] sm:$0x1] %v195
      %s197 = scalar_lea.vmem [#allocation1], %s94
      %s198 = scalar_lea.vmem [#allocation1], %s188
      %v199 = vld [vmem:[%s197] ss:$0 sm:$0xff]
      %v200 = vld [vmem:[%s198] ss:$0 sm:$0xff]
      %201 = vst [vmem:[%s198] sm:$0x1] %v199
      %202 = vst [vmem:[%s197] sm:$0x1] %v200
      %s203 = scalar_lea.vmem [#allocation8], %s94
      %s204 = scalar_lea.vmem [#allocation8], %s188
      %v205 = vld [vmem:[%s203] ss:$0 sm:$0xff]
      %v206 = vld [vmem:[%s204] ss:$0 sm:$0xff]
      %207 = vst [vmem:[%s204] sm:$0x1] %v205
      %208 = vst [vmem:[%s203] sm:$0x1] %v206
      %vm209 = vcmp.ne.f32.partialorder %v200, 0.0
      %vm210 = vmand %vm192, %vm209
      %v211 = vsel %vm210, %v200, 1.0
      %v212 = vlaneseq
      %v213 = vand.u32 %v212, 127
      %v214 = vstv %s94
      %vm215 = vcmp.gt.s32.totalorder %v213, %v214
      %v216 = vsel %vm215, %v200, 0.0
      %v217 = vlaneseq
      %v218 = vshrl.u32 %v217, 7
      %v219 = vmov %v218
      %v220 = vld [vmem:[#allocation1] sm:$0xff]
      %v222 = vstv %s94
      %vm223 = vcmp.gt.s32.totalorder %v219, %v222
      %v224 = vsel %vm223, %v211, 1.0
      %v225 = vrcp.pop %v224
      %v226 = vmul.f32 %v224, %v225
      %v227 = vsub.f32 1.0, %v226
      %v228 = vmul.f32 %v225, %v227
      %v229 = vadd.f32 %v225, %v228
      %vm230 = vweird.f32 %v224
      %vm231 = vweird.f32 %v225
      %vm232 = vmor %vm230, %vm231
      %v233 = vsel %vm232, %v225, %v229
      %v234 = vand.u32 2147483647, %v224
      %vm235 = vcmp.eq.f32.partialorder %v234, 8.507059e+37
      %v236 = vand.u32 %v224, 2147483648
      %v237 = vor.u32 1.1754944e-38, %v236
      %v238 = vsel %vm235, %v237, %v233
      %v239 = vmul.f32 %v220, %v238
      %vm240 = vmand %vm223, %vm192
      %v241 = vsel %vm240, %v239, 0.0
      %242 = vadd.xlane.f32.xlu0 %v241
      %v243 = vpop.xlane.xlu0 %242
      %v244 = vmul.f32 %v243, %v216
      %v245 = vsub.f32 %v239, %v244
      %246 = vst [vmem:[#allocation1] sm:$0xff] %v245
      %s247 = scalar_lea.vmem [#allocation1], 8
      %v248 = vld [vmem:[%s247] sm:$0xff]
      %v249 = vadd.s32 %v219, 8
      %v250 = vstv %s94
      %vm251 = vcmp.gt.s32.totalorder %v249, %v250
      %v252 = vsel %vm251, %v211, 1.0
      %v253 = vrcp.pop %v252
      %v254 = vmul.f32 %v252, %v253
      %v255 = vsub.f32 1.0, %v254
      %v256 = vmul.f32 %v253, %v255
      %v257 = vadd.f32 %v253, %v256
      %vm258 = vweird.f32 %v252
      %vm259 = vweird.f32 %v253
      %vm260 = vmor %vm258, %vm259
      %v261 = vsel %vm260, %v253, %v257
      %v262 = vand.u32 2147483647, %v252
      %vm263 = vcmp.eq.f32.partialorder %v262, 8.507059e+37
      %v264 = vand.u32 %v252, 2147483648
      %v265 = vor.u32 1.1754944e-38, %v264
      %v266 = vsel %vm263, %v265, %v261
      %v267 = vmul.f32 %v248, %v266
      %vm268 = vmand %vm251, %vm192
      %v269 = vsel %vm268, %v267, 0.0
      %270 = vadd.xlane.f32.xlu0 %v269
      %v271 = vpop.xlane.xlu0 %270
      %v272 = vmul.f32 %v271, %v216
      %v273 = vsub.f32 %v267, %v272
      %274 = vst [vmem:[%s247] sm:$0xff] %v273
      %s275 = scalar_lea.vmem [#allocation1], 16
      %v276 = vld [vmem:[%s275] sm:$0xff]
      %v277 = vadd.s32 %v219, 16
      %v278 = vstv %s94
      %vm279 = vcmp.gt.s32.totalorder %v277, %v278
      %v280 = vsel %vm279, %v211, 1.0
      %v281 = vrcp.pop %v280
      %v282 = vmul.f32 %v280, %v281
      %v283 = vsub.f32 1.0, %v282
      %v284 = vmul.f32 %v281, %v283
      %v285 = vadd.f32 %v281, %v284
      %vm286 = vweird.f32 %v280
      %vm287 = vweird.f32 %v281
      %vm288 = vmor %vm286, %vm287
      %v289 = vsel %vm288, %v281, %v285
      %v290 = vand.u32 2147483647, %v280
      %vm291 = vcmp.eq.f32.partialorder %v290, 8.507059e+37
      %v292 = vand.u32 %v280, 2147483648
      %v293 = vor.u32 1.1754944e-38, %v292
      %v294 = vsel %vm291, %v293, %v289
      %v295 = vmul.f32 %v276, %v294
      %vm296 = vmand %vm279, %vm192
      %v297 = vsel %vm296, %v295, 0.0
      %298 = vadd.xlane.f32.xlu0 %v297
      %v299 = vpop.xlane.xlu0 %298
      %v300 = vmul.f32 %v299, %v216
      %v301 = vsub.f32 %v295, %v300
      %302 = vst [vmem:[%s275] sm:$0xff] %v301
      %s303 = scalar_lea.vmem [#allocation1], 24
      %v304 = vld [vmem:[%s303] sm:$0xff]
      %v305 = vadd.s32 %v219, 24
      %v306 = vstv %s94
      %vm307 = vcmp.gt.s32.totalorder %v305, %v306
      %v308 = vsel %vm307, %v211, 1.0
      %v309 = vrcp.pop %v308
      %v310 = vmul.f32 %v308, %v309
      %v311 = vsub.f32 1.0, %v310
      %v312 = vmul.f32 %v309, %v311
      %v313 = vadd.f32 %v309, %v312
      %vm314 = vweird.f32 %v308
      %vm315 = vweird.f32 %v309
      %vm316 = vmor %vm314, %vm315
      %v317 = vsel %vm316, %v309, %v313
      %v318 = vand.u32 2147483647, %v308
      %vm319 = vcmp.eq.f32.partialorder %v318, 8.507059e+37
      %v320 = vand.u32 %v308, 2147483648
      %v321 = vor.u32 1.1754944e-38, %v320
      %v322 = vsel %vm319, %v321, %v317
      %v323 = vmul.f32 %v304, %v322
      %vm324 = vmand %vm307, %vm192
      %v325 = vsel %vm324, %v323, 0.0
      %326 = vadd.xlane.f32.xlu0 %v325
      %v327 = vpop.xlane.xlu0 %326
      %v328 = vmul.f32 %v327, %v216
      %v329 = vsub.f32 %v323, %v328
      %330 = vst [vmem:[%s303] sm:$0xff] %v329
    $region35: #{custom-call.2} parent=1 // loop_footer
      %s98 = sadd.s32 1, %s94
    $region36: #{custom-call.2} parent=1 // loop_footer_branch
      %93 = sbr.rel target = $region32
    $region37: #{custom-call.2} parent=1 // loop_exit
      _
    %v331 = vld [vmem:[#allocation8] sm:$0xff]
    %s332 = scalar_lea.vmem [#allocation8], 8
    %v333 = vld [vmem:[%s332] sm:$0xff]
    %s334 = scalar_lea.vmem [#allocation8], 16
    %v335 = vld [vmem:[%s334] sm:$0xff]
    %s336 = scalar_lea.vmem [#allocation8], 24
    %v337 = vld [vmem:[%s336] sm:$0xff]
    %s338 = scalar_lea.vmem [#allocation8], 32
    %s339 = scalar_lea.vmem [#allocation8], 40
    %s340 = scalar_lea.vmem [#allocation8], 48
    %s341 = scalar_lea.vmem [#allocation8], 56
    %s342 = scalar_lea.vmem [#allocation8], 64
    %s343 = scalar_lea.vmem [#allocation8], 72
    %s344 = scalar_lea.vmem [#allocation8], 80
    %s345 = scalar_lea.vmem [#allocation8], 88
    %s346 = scalar_lea.vmem [#allocation8], 96
    %s347 = scalar_lea.vmem [#allocation8], 104
    %s348 = scalar_lea.vmem [#allocation8], 112
    %s349 = scalar_lea.vmem [#allocation8], 120
    %350 = vxpose.xlu0.b32.start [1/16] %v331, 128
    %351 = vxpose.xlu0.b32.cont [2/16] %v333, 128
    %352 = vxpose.xlu0.b32.cont [3/16] %v335, 128
    %353 = vxpose.xlu0.b32.cont [4/16] %v337, 128
    %354 = vxpose.xlu0.b32.cont [5/16] 0, 128
    %355 = vxpose.xlu0.b32.cont [6/16] 0, 128
    %356 = vxpose.xlu0.b32.cont [7/16] 0, 128
    %357 = vxpose.xlu0.b32.cont [8/16] 0, 128
    %358 = vxpose.xlu0.b32.cont [9/16] 0, 128
    %359 = vxpose.xlu0.b32.cont [10/16] 0, 128
    %360 = vxpose.xlu0.b32.cont [11/16] 0, 128
    %361 = vxpose.xlu0.b32.cont [12/16] 0, 128
    %362 = vxpose.xlu0.b32.cont [13/16] 0, 128
    %363 = vxpose.xlu0.b32.cont [14/16] 0, 128
    %364 = vxpose.xlu0.b32.cont [15/16] 0, 128
    %365 = vxpose.xlu0.b32.end [16/16] 0, 128
    %v366 = vpop.trf.xlu0
    %v367 = vpop.trf.xlu0
    %v368 = vpop.trf.xlu0
    %v369 = vpop.trf.xlu0
    %v370 = vpop.trf.xlu0
    %v371 = vpop.trf.xlu0
    %v372 = vpop.trf.xlu0
    %v373 = vpop.trf.xlu0
    %v374 = vpop.trf.xlu0
    %v375 = vpop.trf.xlu0
    %v376 = vpop.trf.xlu0
    %v377 = vpop.trf.xlu0
    %v378 = vpop.trf.xlu0
    %v379 = vpop.trf.xlu0
    %v380 = vpop.trf.xlu0
    %v381 = vpop.trf.xlu0
    %382 = vst [vmem:[#allocation5] sm:$0x1] %v366
    %s384 = ssub.s32 2, 1
    %v385 = vld [vmem:[#allocation2] sm:%s384]
    %s387 = ssub.s32 2, 1
    %388 = vst [vmem:[#allocation3] sm:%s387] %v385
    %s390 = ssub.s32 2, 1
    %v391 = vld [vmem:[#allocation5] sm:%s390]
    %s393 = ssub.s32 2, 1
    %394 = vst [vmem:[#allocation6] sm:%s393] %v391
    // Predicated region
    $region38: #{custom-call.2} parent=1 // pred_check
      _
    $region39: #{custom-call.2} parent=1 // pred_check_branch
      %396 = sbr.rel (0) target = $region41
    $region40: #{custom-call.2} parent=1 // pred_region
      %p398 = scmp.gt.s32.totalorder 4, 0
      // Predicated region
      $region42: #{custom-call.2} parent=40 // pred_check
        %p399 = pneg %p398
      $region43: #{custom-call.2} parent=40 // pred_check_branch
        %401 = sbr.rel (%p399) target = $region45
      $region44: #{custom-call.2} parent=40 // pred_region
        %s402 = ssub.s32 4, 1
        %s403 = smul.u32 %s402, 8
        %s404 = scalar_lea.vmem [#allocation1], %s403
        %v405 = vld [vmem:[#allocation1] sm:$0xff]
        // While loop
        $region46: #{custom-call.2} parent=44 // loop_pre_header
          _
        $region47: #{custom-call.2} parent=44 // loop_header
          %s406 = sphi [#allocation1], %s428
          %s407 = sphi %s1, %s429
          %v408 = vphi %v405, %v430
          %s409 = ssub.s32 %s404, 64
          %p410 = scmp.gt.s32.totalorder %s406, %s409
        $region48: #{custom-call.2} parent=44 // loop_header_branch
          %412 = sbr.rel (%p410) target = $region52
        $region49: #{custom-call.2} parent=44 // loop_body
          %413 = vst [vmem:[%s407] sm:$0xff] %v408
          %v414 = vld [vmem:[%s406 + $0x8] sm:$0xff]
          %415 = vst [vmem:[%s407 + $0x8] sm:$0xff] %v414
          %v416 = vld [vmem:[%s406 + $0x10] sm:$0xff]
          %417 = vst [vmem:[%s407 + $0x10] sm:$0xff] %v416
          %v418 = vld [vmem:[%s406 + $0x18] sm:$0xff]
          %419 = vst [vmem:[%s407 + $0x18] sm:$0xff] %v418
          %v420 = vld [vmem:[%s406 + $0x20] sm:$0xff]
          %421 = vst [vmem:[%s407 + $0x20] sm:$0xff] %v420
          %v422 = vld [vmem:[%s406 + $0x28] sm:$0xff]
          %423 = vst [vmem:[%s407 + $0x28] sm:$0xff] %v422
          %v424 = vld [vmem:[%s406 + $0x30] sm:$0xff]
          %425 = vst [vmem:[%s407 + $0x30] sm:$0xff] %v424
          %v426 = vld [vmem:[%s406 + $0x38] sm:$0xff]
          %427 = vst [vmem:[%s407 + $0x38] sm:$0xff] %v426
        $region50: #{custom-call.2} parent=44 // loop_footer
          %s428 = scalar_lea.vmem %s406, 64
          %s429 = scalar_lea.vmem %s407, 64
          %v430 = vld [vmem:[%s406 + $0x40] sm:$0xff]
        $region51: #{custom-call.2} parent=44 // loop_footer_branch
          %431 = sbr.rel target = $region47
        $region52: #{custom-call.2} parent=44 // loop_exit
          _
        // While loop
        $region53: #{custom-call.2} parent=44 // loop_pre_header
          _
        $region54: #{custom-call.2} parent=44 // loop_header
          %s432 = sphi %s406, %s440
          %s433 = sphi %s407, %s441
          %v434 = vphi %v408, %v434
          %p435 = scmp.gt.s32.totalorder %s432, %s404
        $region55: #{custom-call.2} parent=44 // loop_header_branch
          %437 = sbr.rel (%p435) target = $region59
        $region56: #{custom-call.2} parent=44 // loop_body
          %v438 = vld [vmem:[%s432] sm:$0xff]
          %439 = vst [vmem:[%s433] sm:$0xff] %v438
        $region57: #{custom-call.2} parent=44 // loop_footer
          %s440 = scalar_lea.vmem %s432, 8
          %s441 = scalar_lea.vmem %s433, 8
        $region58: #{custom-call.2} parent=44 // loop_footer_branch
          %442 = sbr.rel target = $region54
        $region59: #{custom-call.2} parent=44 // loop_exit
          _
      $region45: #{custom-call.2} parent=40 // pred_fallthru
        _
      %s444 = ssub.s32 1, 1
      %s445 = smul.u32 4, 8
      %s446 = scalar_lea.vmem %s1, %s445
      %s447 = smul.u32 4, 8
      %s448 = scalar_lea.vmem [#allocation1], %s447
      %v449 = vld [vmem:[%s448] sm:%s444]
      %450 = vst [vmem:[%s446] sm:%s444] %v449
    $region41: #{custom-call.2} parent=1 // pred_fallthru
      _
    // Predicated region
    $region60: #{custom-call.2} parent=1 // pred_check
      _
    $region61: #{custom-call.2} parent=1 // pred_check_branch
      %452 = sbr.rel (0) target = $region63
    $region62: #{custom-call.2} parent=1 // pred_region
      %454 = vsyncadd [#allocation4], 0
      %s456 = sshll.u32 [#allocation3], 4
      %s457 = int_to_ptr.vmem [resolvable:$true] %s456
      %s458 = sshll.u32 %s2, 4
      %s459 = int_to_ptr.hbm [resolvable:$true] %s458
      %461 = dma.vmem_to_hbm [thread:$0]  %s457, 16, %s459, [#allocation4]
    $region63: #{custom-call.2} parent=1 // pred_fallthru
      _
    // Predicated region
    $region64: #{custom-call.2} parent=1 // pred_check
      _
    $region65: #{custom-call.2} parent=1 // pred_check_branch
      %463 = sbr.rel (0) target = $region67
    $region66: #{custom-call.2} parent=1 // pred_region
      %465 = vsyncadd [#allocation7], 0
      %s467 = sshll.u32 [#allocation6], 4
      %s468 = int_to_ptr.vmem [resolvable:$true] %s467
      %s469 = sshll.u32 %s3, 4
      %s470 = int_to_ptr.hbm [resolvable:$true] %s469
      %472 = dma.vmem_to_hbm [thread:$0]  %s468, 16, %s470, [#allocation7]
    $region67: #{custom-call.2} parent=1 // pred_fallthru
      _
    // Predicated region
    $region68: #{custom-call.2} parent=1 // pred_check
      _
    $region69: #{custom-call.2} parent=1 // pred_check_branch
      %474 = sbr.rel (0) target = $region71
    $region70: #{custom-call.2} parent=1 // pred_region
      %476 = dma.done [#allocation4], 16
    $region71: #{custom-call.2} parent=1 // pred_fallthru
      _
    // Predicated region
    $region72: #{custom-call.2} parent=1 // pred_check
      _
    $region73: #{custom-call.2} parent=1 // pred_check_branch
      %478 = sbr.rel (0) target = $region75
    $region74: #{custom-call.2} parent=1 // pred_region
      %480 = dma.done [#allocation7], 16
    $region75: #{custom-call.2} parent=1 // pred_fallthru
      _
    %481 = vsyncpa [#allocation4], 1
    %482 = vsyncpa [#allocation7], 1

// kernel: enigma_flow_forward.1
$region0: #{enigma_flow_forward.1}
  #allocation0 [shape = 'u32[]', space=smem, size = 0x4, offset = 0x4, fixed_abs, tag = 'smem constant byte address 0x4 - core index']
  #allocation1 [shape = 'u32[72,128]{1,0:T(1,128)}', space=vmem, size = 0x9000, scoped, tag = 'internal scratch']
  %s0 = inlined_call_operand.vmem [shape: f32[2,128], index: 0, kind: input, shape index: {}]
  %s1 = inlined_call_operand.vmem [shape: f32[128,128], index: 1, kind: input, shape index: {}]
  %s2 = inlined_call_operand.vmem [shape: f32[2,128,128], index: 2, kind: input, shape index: {}]
  %s3 = inlined_call_operand.vmem [shape: f32[128,128], index: 3, kind: input, shape index: {}]
  %s4 = inlined_call_operand.vmem [shape: f32[2,128], index: 4, kind: output, shape index: {}]
  %s5 = sld [smem:[#allocation0]]
  $region26: #{enigma_flow_forward.1} parent=0
    _
  %s7 = ssub.s32 1, %s5
  %s8 = scalar_select 0, %s7, %s5
  // Predicated region
  $region2: #{enigma_flow_forward.1} parent=0 // pred_check
    _
  $region3: #{enigma_flow_forward.1} parent=0 // pred_check_branch
    %10 = sbr.rel (0) target = $region5
  $region4: #{enigma_flow_forward.1} parent=0 // pred_region
    _
  $region5: #{enigma_flow_forward.1} parent=0 // pred_fallthru
    _
  // Predicated region
  $region6: #{enigma_flow_forward.1} parent=0 // pred_check
    _
  $region7: #{enigma_flow_forward.1} parent=0 // pred_check_branch
    %12 = sbr.rel (0) target = $region9
  $region8: #{enigma_flow_forward.1} parent=0 // pred_region
    _
  $region9: #{enigma_flow_forward.1} parent=0 // pred_fallthru
    _
  // Predicated region
  $region10: #{enigma_flow_forward.1} parent=0 // pred_check
    _
  $region11: #{enigma_flow_forward.1} parent=0 // pred_check_branch
    %14 = sbr.rel (0) target = $region13
  $region12: #{enigma_flow_forward.1} parent=0 // pred_region
    _
  $region13: #{enigma_flow_forward.1} parent=0 // pred_fallthru
    _
  // Predicated region
  $region14: #{enigma_flow_forward.1} parent=0 // pred_check
    _
  $region15: #{enigma_flow_forward.1} parent=0 // pred_check_branch
    %16 = sbr.rel (0) target = $region17
  $region16: #{enigma_flow_forward.1} parent=0 // pred_region
    _
  $region17: #{enigma_flow_forward.1} parent=0 // pred_fallthru
    _
  %v17 = vld [vmem:[%s0] sm:$0x3]
  %v18 = vld [vmem:[%s1] sm:$0xff]
  %v19 = vld [vmem:[%s1 + $0x8] sm:$0xff]
  %v20 = vld [vmem:[%s1 + $0x10] sm:$0xff]
  %v21 = vld [vmem:[%s1 + $0x18] sm:$0xff]
  %v22 = vld [vmem:[%s1 + $0x20] sm:$0xff]
  %v23 = vld [vmem:[%s1 + $0x28] sm:$0xff]
  %v24 = vld [vmem:[%s1 + $0x30] sm:$0xff]
  %v25 = vld [vmem:[%s1 + $0x38] sm:$0xff]
  %v26 = vld [vmem:[%s1 + $0x40] sm:$0xff]
  %v27 = vld [vmem:[%s1 + $0x48] sm:$0xff]
  %v28 = vld [vmem:[%s1 + $0x50] sm:$0xff]
  %v29 = vld [vmem:[%s1 + $0x58] sm:$0xff]
  %v30 = vld [vmem:[%s1 + $0x60] sm:$0xff]
  %v31 = vld [vmem:[%s1 + $0x68] sm:$0xff]
  %v32 = vld [vmem:[%s1 + $0x70] sm:$0xff]
  %v33 = vld [vmem:[%s1 + $0x78] sm:$0xff]
  %34 = vmatpush.msra.mxu0 %v33
  %35 = vmatpush.msra.mxu0 %v32
  %36 = vmatpush.msra.mxu0 %v31
  %37 = vmatpush.msra.mxu0 %v30
  %38 = vmatpush.msra.mxu0 %v29
  %39 = vmatpush.msra.mxu0 %v28
  %40 = vmatpush.msra.mxu0 %v27
  %41 = vmatpush.msra.mxu0 %v26
  %42 = vmatpush.msra.mxu0 %v25
  %43 = vmatpush.msra.mxu0 %v24
  %44 = vmatpush.msra.mxu0 %v23
  %45 = vmatpush.msra.mxu0 %v22
  %46 = vmatpush.msra.mxu0 %v21
  %47 = vmatpush.msra.mxu0 %v20
  %48 = vmatpush.msra.mxu0 %v19
  %49 = vmatpush.msra.mxu0 %v18
  %50 = vmatmul.f32.gmra.mxu0 %v17
  %v51 = vpop.f32.mrf.mxu0
  %v52 = vadd.f32 0.0, %v51
  %53 = vdwg.mxu0
  %v54 = vld [vmem:[%s2] sm:$0xff]
  %v55 = vld [vmem:[%s2 + $0x8] sm:$0xff]
  %v56 = vld [vmem:[%s2 + $0x10] sm:$0xff]
  %v57 = vld [vmem:[%s2 + $0x18] sm:$0xff]
  %v58 = vld [vmem:[%s2 + $0x20] sm:$0xff]
  %v59 = vld [vmem:[%s2 + $0x28] sm:$0xff]
  %v60 = vld [vmem:[%s2 + $0x30] sm:$0xff]
  %v61 = vld [vmem:[%s2 + $0x38] sm:$0xff]
  %v62 = vld [vmem:[%s2 + $0x40] sm:$0xff]
  %v63 = vld [vmem:[%s2 + $0x48] sm:$0xff]
  %v64 = vld [vmem:[%s2 + $0x50] sm:$0xff]
  %v65 = vld [vmem:[%s2 + $0x58] sm:$0xff]
  %v66 = vld [vmem:[%s2 + $0x60] sm:$0xff]
  %v67 = vld [vmem:[%s2 + $0x68] sm:$0xff]
  %v68 = vld [vmem:[%s2 + $0x70] sm:$0xff]
  %v69 = vld [vmem:[%s2 + $0x78] sm:$0xff]
  %70 = vmatpush.msra.mxu0 %v69
  %71 = vmatpush.msra.mxu0 %v68
  %72 = vmatpush.msra.mxu0 %v67
  %73 = vmatpush.msra.mxu0 %v66
  %74 = vmatpush.msra.mxu0 %v65
  %75 = vmatpush.msra.mxu0 %v64
  %76 = vmatpush.msra.mxu0 %v63
  %77 = vmatpush.msra.mxu0 %v62
  %78 = vmatpush.msra.mxu0 %v61
  %79 = vmatpush.msra.mxu0 %v60
  %80 = vmatpush.msra.mxu0 %v59
  %81 = vmatpush.msra.mxu0 %v58
  %82 = vmatpush.msra.mxu0 %v57
  %83 = vmatpush.msra.mxu0 %v56
  %84 = vmatpush.msra.mxu0 %v55
  %85 = vmatpush.msra.mxu0 %v54
  %86 = vmatmul.f32.gmra.mxu0 %v52
  %v87 = vpop.f32.mrf.mxu0
  %v88 = vadd.f32 0.0, %v87
  %89 = vdwg.mxu0
  %v90 = vtanh.pop %v88
  %v91 = vadd.f32 %v52, %v90
  %s92 = scalar_lea.vmem %s2, 128
  %v93 = vld [vmem:[%s92] sm:$0xff]
  %v94 = vld [vmem:[%s92 + $0x8] sm:$0xff]
  %v95 = vld [vmem:[%s92 + $0x10] sm:$0xff]
  %v96 = vld [vmem:[%s92 + $0x18] sm:$0xff]
  %v97 = vld [vmem:[%s92 + $0x20] sm:$0xff]
  %v98 = vld [vmem:[%s92 + $0x28] sm:$0xff]
  %v99 = vld [vmem:[%s92 + $0x30] sm:$0xff]
  %v100 = vld [vmem:[%s92 + $0x38] sm:$0xff]
  %v101 = vld [vmem:[%s92 + $0x40] sm:$0xff]
  %v102 = vld [vmem:[%s92 + $0x48] sm:$0xff]
  %v103 = vld [vmem:[%s92 + $0x50] sm:$0xff]
  %v104 = vld [vmem:[%s92 + $0x58] sm:$0xff]
  %v105 = vld [vmem:[%s92 + $0x60] sm:$0xff]
  %v106 = vld [vmem:[%s92 + $0x68] sm:$0xff]
  %v107 = vld [vmem:[%s92 + $0x70] sm:$0xff]
  %v108 = vld [vmem:[%s92 + $0x78] sm:$0xff]
  %109 = vmatpush.msra.mxu0 %v108
  %110 = vmatpush.msra.mxu0 %v107
  %111 = vmatpush.msra.mxu0 %v106
  %112 = vmatpush.msra.mxu0 %v105
  %113 = vmatpush.msra.mxu0 %v104
  %114 = vmatpush.msra.mxu0 %v103
  %115 = vmatpush.msra.mxu0 %v102
  %116 = vmatpush.msra.mxu0 %v101
  %117 = vmatpush.msra.mxu0 %v100
  %118 = vmatpush.msra.mxu0 %v99
  %119 = vmatpush.msra.mxu0 %v98
  %120 = vmatpush.msra.mxu0 %v97
  %121 = vmatpush.msra.mxu0 %v96
  %122 = vmatpush.msra.mxu0 %v95
  %123 = vmatpush.msra.mxu0 %v94
  %124 = vmatpush.msra.mxu0 %v93
  %125 = vmatmul.f32.gmra.mxu0 %v91
  %v126 = vpop.f32.mrf.mxu0
  %v127 = vadd.f32 0.0, %v126
  %128 = vdwg.mxu0
  %v129 = vtanh.pop %v127
  %v130 = vadd.f32 %v91, %v129
  %v131 = vld [vmem:[%s3] sm:$0xff]
  %v132 = vld [vmem:[%s3 + $0x8] sm:$0xff]
  %v133 = vld [vmem:[%s3 + $0x10] sm:$0xff]
  %v134 = vld [vmem:[%s3 + $0x18] sm:$0xff]
  %v135 = vld [vmem:[%s3 + $0x20] sm:$0xff]
  %v136 = vld [vmem:[%s3 + $0x28] sm:$0xff]
  %v137 = vld [vmem:[%s3 + $0x30] sm:$0xff]
  %v138 = vld [vmem:[%s3 + $0x38] sm:$0xff]
  %v139 = vld [vmem:[%s3 + $0x40] sm:$0xff]
  %v140 = vld [vmem:[%s3 + $0x48] sm:$0xff]
  %v141 = vld [vmem:[%s3 + $0x50] sm:$0xff]
  %v142 = vld [vmem:[%s3 + $0x58] sm:$0xff]
  %v143 = vld [vmem:[%s3 + $0x60] sm:$0xff]
  %v144 = vld [vmem:[%s3 + $0x68] sm:$0xff]
  %v145 = vld [vmem:[%s3 + $0x70] sm:$0xff]
  %v146 = vld [vmem:[%s3 + $0x78] sm:$0xff]
  %147 = vmatpush.msra.mxu0 %v146
  %148 = vmatpush.msra.mxu0 %v145
  %149 = vmatpush.msra.mxu0 %v144
  %150 = vmatpush.msra.mxu0 %v143
  %151 = vmatpush.msra.mxu0 %v142
  %152 = vmatpush.msra.mxu0 %v141
  %153 = vmatpush.msra.mxu0 %v140
  %154 = vmatpush.msra.mxu0 %v139
  %155 = vmatpush.msra.mxu0 %v138
  %156 = vmatpush.msra.mxu0 %v137
  %157 = vmatpush.msra.mxu0 %v136
  %158 = vmatpush.msra.mxu0 %v135
  %159 = vmatpush.msra.mxu0 %v134
  %160 = vmatpush.msra.mxu0 %v133
  %161 = vmatpush.msra.mxu0 %v132
  %162 = vmatpush.msra.mxu0 %v131
  %163 = vmatmul.f32.gmra.mxu0 %v130
  %v164 = vpop.f32.mrf.mxu0
  %v165 = vadd.f32 0.0, %v164
  %166 = vdwg.mxu0
  %167 = vst [vmem:[%s4] sm:$0x3] %v165
  // Predicated region
  $region18: #{enigma_flow_forward.1} parent=0 // pred_check
    _
  $region19: #{enigma_flow_forward.1} parent=0 // pred_check_branch
    %169 = sbr.rel (0) target = $region21
  $region20: #{enigma_flow_forward.1} parent=0 // pred_region
    _
  $region21: #{enigma_flow_forward.1} parent=0 // pred_fallthru
    _
  // Predicated region
  $region22: #{enigma_flow_forward.1} parent=0 // pred_check
    _
  $region23: #{enigma_flow_forward.1} parent=0 // pred_check_branch
    %171 = sbr.rel (0) target = $region25
  $region24: #{enigma_flow_forward.1} parent=0 // pred_region
    _
  $region25: #{enigma_flow_forward.1} parent=0 // pred_fallthru
    _

</llo_original>
